<compile_context>
chip_gen: v7x
topology: tpu7x:2x2x1
jax: 0.10.0
libtpu: 0.0.40
codegen_flags: <defaults>
</compile_context>

<pallas_src>
import functools

import jax
import jax.numpy as jnp
from jax import lax
from jax.experimental import pallas as pl
from jax.experimental.pallas import tpu as pltpu


# ----------------------------- Pallas kernel --------------------------------
def _equiv_update_kernel(inp_ref, w1_ref, b1_ref, w2_ref, b2_ref, w3_ref,
                         cdiff_ref, row_ref, coordT_ref, out_ref, acc_ref,
                         *, tile_n, use_tanh, coords_range,
                         normalization_factor, aggregation_method):
    ei = pl.program_id(1)

    @pl.when(ei == 0)
    def _():
        acc_ref[...] = jnp.zeros_like(acc_ref)

    # ---- coord_mlp on this edge tile (bf16 MXU operands, f32 accumulation) ----
    x = inp_ref[...]                                               # [TE, Kp] bf16
    h1 = jnp.dot(x, w1_ref[...], preferred_element_type=jnp.float32) + b1_ref[...]
    h1 = h1 * jax.nn.sigmoid(h1)                                   # SiLU (f32)
    h2 = jnp.dot(h1.astype(jnp.bfloat16), w2_ref[...],
                 preferred_element_type=jnp.float32) + b2_ref[...]
    h2 = h2 * jax.nn.sigmoid(h2)                                   # SiLU (f32)
    # [TE,H] x [H,1] as VPU multiply + cross-lane (XLU) reduce instead of a
    # nearly-empty MXU pass.
    phi = jnp.sum(h2 * w3_ref[...], axis=-1, keepdims=True)        # [TE, 1] f32
    if use_tanh:
        phi = jnp.tanh(phi) * coords_range

    trans = cdiff_ref[...] * phi                                   # [TE, 8]
    if aggregation_method == 'mean':
        # Put a per-edge 1.0 into padded column 3 so the same segment-sum matmul
        # also produces per-node counts (padded edges have row == -1 and thus a
        # zero onehot row, so they contribute neither sums nor counts).
        ones_col = (lax.broadcasted_iota(jnp.int32, trans.shape, 1) == 3)
        trans = trans + ones_col.astype(jnp.float32)

    # ---- segment-sum for this (edge-tile, node-tile) pair on the MXU (f32) ----
    node_ids = pl.program_id(0) * tile_n + lax.broadcasted_iota(
        jnp.int32, (trans.shape[0], tile_n), 1)                    # [TE, TN]
    onehot = (row_ref[...] == node_ids).astype(jnp.float32)        # [TE, TN]
    acc_ref[...] += lax.dot_general(
        trans, onehot, dimension_numbers=(((0,), (0,)), ((), ())),
        preferred_element_type=jnp.float32)                        # [8, TN]

    @pl.when(ei == pl.num_programs(1) - 1)
    def _():
        agg = acc_ref[...]
        if aggregation_method == 'sum':
            agg = agg * (1.0 / normalization_factor)
        else:  # 'mean'
            counts = agg[3:4, :]                                   # [1, TN]
            counts = jnp.where(counts == 0.0, 1.0, counts)
            agg = agg / counts
        out_ref[...] = coordT_ref[...] + agg


# ------------------------------ JAX wrapper ----------------------------------
def equivariant_update(h, coord, edge_index, coord_diff, edge_attr, params, *,
                       normalization_factor=100.0, aggregation_method='sum',
                       use_tanh=False, coords_range=10.0,
                       tile_e=128, tile_n=128):
    row, col = edge_index
    N = coord.shape[0]
    E = row.shape[0]
    w1, b1, w2, b2, w3 = params
    K, H = w1.shape                       # K = 2*hidden_nf + edges_in_d

    k_pad = pl.cdiv(K, 128) * 128
    e_pad = pl.cdiv(E, tile_e) * tile_e
    n_pad = pl.cdiv(N, tile_n) * tile_n

    # Glue: gather node features per edge, concat, zero-pad K->128 / E->tile,
    # cast MXU operands to bf16 (accumulation stays f32 inside the kernel).
    # TODO(synk): move the gather in-kernel (scalar-prefetch row/col) or split W1
    #             per endpoint to avoid materializing [E, 2H+De] in HBM.
    inp = jnp.concatenate([h[row], h[col], edge_attr], axis=1).astype(jnp.float32)
    inp = jnp.pad(inp, ((0, e_pad - E), (0, k_pad - K))).astype(jnp.bfloat16)

    w1p = jnp.pad(w1.astype(jnp.float32), ((0, k_pad - K), (0, 0))).astype(jnp.bfloat16)
    w2p = w2.astype(jnp.bfloat16)
    b1p = b1.reshape(1, H).astype(jnp.float32)
    b2p = b2.reshape(1, H).astype(jnp.float32)
    w3p = w3.reshape(1, H).astype(jnp.float32)

    # Lane-dense layouts: coord_diff padded to 8 lanes; coord / output kept
    # transposed so the node dim sits on the 128-wide lane axis.
    cdiff = jnp.zeros((e_pad, 8), jnp.float32).at[:E, :3].set(
        coord_diff.astype(jnp.float32))
    rowp = jnp.full((e_pad, 1), -1, jnp.int32).at[:E, 0].set(row.astype(jnp.int32))
    coordT = jnp.zeros((8, n_pad), jnp.float32).at[:3, :N].set(
        coord.astype(jnp.float32).T)

    n_tiles = n_pad // tile_n
    e_tiles = e_pad // tile_e

    kernel = functools.partial(
        _equiv_update_kernel, tile_n=tile_n, use_tanh=use_tanh,
        coords_range=coords_range, normalization_factor=normalization_factor,
        aggregation_method=aggregation_method)

    flops = (2 * e_pad * (k_pad + H) * H + 2 * e_pad * 8 * tile_n) * n_tiles
    cost = pl.CostEstimate(
        flops=int(flops),
        transcendentals=int(n_tiles * e_pad * (2 * H + 1)),
        bytes_accessed=int(n_tiles * (inp.size * 2 + cdiff.size * 4 + rowp.size * 4)
                           + 2 * coordT.size * 4))

    outT = pl.pallas_call(
        kernel,
        out_shape=jax.ShapeDtypeStruct((8, n_pad), jnp.float32),
        grid_spec=pltpu.PrefetchScalarGridSpec(
            num_scalar_prefetch=0,
            grid=(n_tiles, e_tiles),
            in_specs=[
                pl.BlockSpec((tile_e, k_pad), lambda ni, ei: (ei, 0)),   # inp
                pl.BlockSpec((k_pad, H), lambda ni, ei: (0, 0)),         # w1
                pl.BlockSpec((1, H), lambda ni, ei: (0, 0)),             # b1
                pl.BlockSpec((H, H), lambda ni, ei: (0, 0)),             # w2
                pl.BlockSpec((1, H), lambda ni, ei: (0, 0)),             # b2
                pl.BlockSpec((1, H), lambda ni, ei: (0, 0)),             # w3 (row)
                pl.BlockSpec((tile_e, 8), lambda ni, ei: (ei, 0)),       # coord_diff
                pl.BlockSpec((tile_e, 1), lambda ni, ei: (ei, 0)),       # row ids
                pl.BlockSpec((8, tile_n), lambda ni, ei: (0, ni)),       # coord^T
            ],
            out_specs=pl.BlockSpec((8, tile_n), lambda ni, ei: (0, ni)),
            scratch_shapes=[pltpu.VMEM((8, tile_n), jnp.float32)],
        ),
        compiler_params=pltpu.CompilerParams(
            dimension_semantics=("parallel", "arbitrary"),
            vmem_limit_bytes=32 * 1024 * 1024),
        cost_estimate=cost,
        input_output_aliases={8: 0},   # output aliases the padded coord^T buffer
    )(inp, w1p, b1p, w2p, b2p, w3p, cdiff, rowp, coordT)

    return outT[:3, :N].T


# --------------------------- pure-JAX reference -------------------------------
def reference_forward(h, coord, edge_index, coord_diff, edge_attr, params, *,
                      normalization_factor, aggregation_method, use_tanh,
                      coords_range):
    row, col = edge_index
    w1, b1, w2, b2, w3 = params
    x = jnp.concatenate([h[row], h[col], edge_attr], axis=1)
    h1 = jax.nn.silu(x @ w1 + b1.reshape(1, -1))
    h2 = jax.nn.silu(h1 @ w2 + b2.reshape(1, -1))
    phi = h2 @ w3
    if use_tanh:
        phi = jnp.tanh(phi) * coords_range
    trans = coord_diff * phi
    agg = jnp.zeros((coord.shape[0], 3), jnp.float32).at[row].add(trans)
    if aggregation_method == 'sum':
        agg = agg / normalization_factor
    else:
        cnt = jnp.zeros((coord.shape[0], 1), jnp.float32).at[row].add(1.0)
        cnt = jnp.where(cnt == 0, 1.0, cnt)
        agg = agg / cnt
    return coord + agg


# ------------------------------- main ----------------------------------------
if __name__ == "__main__":
    key = jax.random.PRNGKey(0)

    def make_inputs(k, N, E, hidden_nf, edges_in_d):
        input_edge = hidden_nf * 2 + edges_in_d
        ks = jax.random.split(k, 9)

        def xavier(kk, fan_in, fan_out, gain=1.0):
            bound = gain * jnp.sqrt(6.0 / (fan_in + fan_out))
            return jax.random.uniform(kk, (fan_in, fan_out), jnp.float32, -bound, bound)

        w1 = xavier(ks[0], input_edge, hidden_nf)
        b1 = jnp.zeros((1, hidden_nf), jnp.float32)
        w2 = xavier(ks[1], hidden_nf, hidden_nf)
        b2 = jnp.zeros((1, hidden_nf), jnp.float32)
        w3 = xavier(ks[2], hidden_nf, 1, gain=0.001)   # xavier(gain=0.001), no bias
        params = (w1, b1, w2, b2, w3)

        h = jax.random.normal(ks[3], (N, hidden_nf), jnp.float32)
        coord = jax.random.normal(ks[4], (N, 3), jnp.float32)
        row = jax.random.randint(ks[5], (E,), 0, N, jnp.int32)
        col = jax.random.randint(ks[6], (E,), 0, N, jnp.int32)
        coord_diff = jax.random.normal(ks[7], (E, 3), jnp.float32)
        edge_attr = jax.random.normal(ks[8], (E, edges_in_d), jnp.float32)
        return h, coord, (row, col), coord_diff, edge_attr, params

    configs = [
        # small shapes matching the torch module defaults (grid 1x1)
        (8, 64, dict(normalization_factor=100.0, aggregation_method='sum',
                     use_tanh=True, coords_range=10.0)),
        # larger shapes: exercises multi-tile grid (2 node tiles x 4 edge tiles)
        (150, 400, dict(normalization_factor=1.0, aggregation_method='mean',
                        use_tanh=False, coords_range=10.0)),
    ]

    for idx, (N, E, cfg) in enumerate(configs):
        args = make_inputs(jax.random.fold_in(key, idx), N, E, 32, 1)
        fwd = jax.jit(functools.partial(equivariant_update, **cfg))
        out = jax.block_until_ready(fwd(*args))
        ref = reference_forward(*args, **cfg)
        assert out.shape == (N, 3)
        assert jnp.allclose(out, ref, atol=2e-3, rtol=2e-3), \
            f"mismatch vs reference for config {idx}"

    print("KERNEL_OK")
</pallas_src>

<mosaic_0001>
module attributes {stable_mosaic.version = 11 : i64} {
  func.func @_equiv_update_kernel(%arg0: i32, %arg1: i32, %arg2: memref<128x128xbf16, #tpu.memory_space<vmem>>, %arg3: memref<128x32xbf16, #tpu.memory_space<vmem>>, %arg4: memref<1x32xf32, #tpu.memory_space<vmem>>, %arg5: memref<32x32xbf16, #tpu.memory_space<vmem>>, %arg6: memref<1x32xf32, #tpu.memory_space<vmem>>, %arg7: memref<1x32xf32, #tpu.memory_space<vmem>>, %arg8: memref<128x8xf32, #tpu.memory_space<vmem>>, %arg9: memref<128x1xi32, #tpu.memory_space<vmem>>, %arg10: memref<8x128xf32, #tpu.memory_space<vmem>>, %arg11: memref<8x128xf32, #tpu.memory_space<vmem>>, %arg12: memref<8x128xf32, #tpu.memory_space<vmem>>) attributes {dimension_semantics = [#tpu.dimension_semantics<parallel>, #tpu.dimension_semantics<arbitrary>], iteration_bounds = array<i64: 1, 1>, scalar_prefetch = 0 : i64, scratch_operands = 1 : i64, tpu.core_type = #tpu.core_type<tc>, window_params = [{transform_indices = @transform_0, window_bounds = array<i64: 128, 128>}, {pipeline_mode = #tpu.pipeline_mode<synchronous>, transform_indices = @transform_1, window_bounds = array<i64: 128, 32>}, {pipeline_mode = #tpu.pipeline_mode<synchronous>, transform_indices = @transform_2, window_bounds = array<i64: 1, 32>}, {pipeline_mode = #tpu.pipeline_mode<synchronous>, transform_indices = @transform_3, window_bounds = array<i64: 32, 32>}, {pipeline_mode = #tpu.pipeline_mode<synchronous>, transform_indices = @transform_4, window_bounds = array<i64: 1, 32>}, {pipeline_mode = #tpu.pipeline_mode<synchronous>, transform_indices = @transform_5, window_bounds = array<i64: 1, 32>}, {transform_indices = @transform_6, window_bounds = array<i64: 128, 8>}, {transform_indices = @transform_7, window_bounds = array<i64: 128, 1>}, {transform_indices = @transform_8, window_bounds = array<i64: 8, 128>}, {transform_indices = @transform_9, window_bounds = array<i64: 8, 128>}]} {
    %c0_i32 = arith.constant 0 : i32
    %0 = arith.cmpi eq, %arg1, %c0_i32 : i32
    %1 = arith.extui %0 : i1 to i32
    %c0_i32_0 = arith.constant 0 : i32
    %2 = arith.cmpi ne, %1, %c0_i32_0 : i32
    scf.if %2 {
      %cst_28 = arith.constant 0.000000e+00 : f32
      %54 = vector.broadcast %cst_28 : f32 to vector<8x128xf32>
      %c0_29 = arith.constant 0 : index
      %c0_30 = arith.constant 0 : index
      %55 = vector.load %arg12[%c0_29, %c0_30] : memref<8x128xf32, #tpu.memory_space<vmem>>, vector<8x128xf32>
      tpu.vector_store %arg12[%c0_29, %c0_30], %54 {strides = array<i32>} : memref<8x128xf32, #tpu.memory_space<vmem>>, vector<8x128xf32>,
    } else {
    }
    %c0 = arith.constant 0 : index
    %c0_1 = arith.constant 0 : index
    %3 = vector.load %arg2[%c0, %c0_1] : memref<128x128xbf16, #tpu.memory_space<vmem>>, vector<128x128xbf16>
    %c0_2 = arith.constant 0 : index
    %c0_3 = arith.constant 0 : index
    %4 = vector.load %arg3[%c0_2, %c0_3] : memref<128x32xbf16, #tpu.memory_space<vmem>>, vector<128x32xbf16>
    %cst = arith.constant dense<0.000000e+00> : vector<128x32xf32>
    %5 = tpu.matmul %3, %4, %cst {dimension_numbers = #tpu.dot_dimension_numbers<[1], [0], [0], [1], [0, 0, 1, 1], [], []>} : vector<128x128xbf16>, vector<128x32xbf16>, vector<128x32xf32> -> vector<128x32xf32>
    %c0_4 = arith.constant 0 : index
    %c0_5 = arith.constant 0 : index
    %6 = vector.load %arg4[%c0_4, %c0_5] : memref<1x32xf32, #tpu.memory_space<vmem>>, vector<1x32xf32>
    %7 = vector.broadcast %6 : vector<1x32xf32> to vector<128x32xf32>
    %8 = arith.addf %5, %7 : vector<128x32xf32>
    %9 = arith.negf %8 : vector<128x32xf32>
    %10 = math.exp %9 : vector<128x32xf32>
    %cst_6 = arith.constant 1.000000e+00 : f32
    %11 = vector.broadcast %cst_6 : f32 to vector<128x32xf32>
    %12 = arith.addf %11, %10 : vector<128x32xf32>
    %13 = arith.divf %11, %12 : vector<128x32xf32>
    %14 = arith.mulf %8, %13 : vector<128x32xf32>
    %15 = arith.truncf %14 : vector<128x32xf32> to vector<128x32xbf16>
    %c0_7 = arith.constant 0 : index
    %c0_8 = arith.constant 0 : index
    %16 = vector.load %arg5[%c0_7, %c0_8] : memref<32x32xbf16, #tpu.memory_space<vmem>>, vector<32x32xbf16>
    %cst_9 = arith.constant dense<0.000000e+00> : vector<128x32xf32>
    %17 = tpu.matmul %15, %16, %cst_9 {dimension_numbers = #tpu.dot_dimension_numbers<[1], [0], [0], [1], [0, 0, 1, 1], [], []>} : vector<128x32xbf16>, vector<32x32xbf16>, vector<128x32xf32> -> vector<128x32xf32>
    %c0_10 = arith.constant 0 : index
    %c0_11 = arith.constant 0 : index
    %18 = vector.load %arg6[%c0_10, %c0_11] : memref<1x32xf32, #tpu.memory_space<vmem>>, vector<1x32xf32>
    %19 = vector.broadcast %18 : vector<1x32xf32> to vector<128x32xf32>
    %20 = arith.addf %17, %19 : vector<128x32xf32>
    %21 = arith.negf %20 : vector<128x32xf32>
    %22 = math.exp %21 : vector<128x32xf32>
    %cst_12 = arith.constant 1.000000e+00 : f32
    %23 = vector.broadcast %cst_12 : f32 to vector<128x32xf32>
    %24 = arith.addf %23, %22 : vector<128x32xf32>
    %25 = arith.divf %23, %24 : vector<128x32xf32>
    %26 = arith.mulf %20, %25 : vector<128x32xf32>
    %c0_13 = arith.constant 0 : index
    %c0_14 = arith.constant 0 : index
    %27 = vector.load %arg7[%c0_13, %c0_14] : memref<1x32xf32, #tpu.memory_space<vmem>>, vector<1x32xf32>
    %28 = vector.broadcast %27 : vector<1x32xf32> to vector<128x32xf32>
    %29 = arith.mulf %26, %28 : vector<128x32xf32>
    %cst_15 = arith.constant dense<0.000000e+00> : vector<128xf32>
    %30 = vector.multi_reduction <add>, %29, %cst_15 [1] : vector<128x32xf32> to vector<128xf32>
    %31 = vector.shape_cast %30 : vector<128xf32> to vector<128x1xf32>
    %32 = math.tanh %31 : vector<128x1xf32>
    %cst_16 = arith.constant 1.000000e+01 : f32
    %33 = vector.broadcast %cst_16 : f32 to vector<128x1xf32>
    %34 = arith.mulf %32, %33 : vector<128x1xf32>
    %c0_17 = arith.constant 0 : index
    %c0_18 = arith.constant 0 : index
    %35 = vector.load %arg8[%c0_17, %c0_18] : memref<128x8xf32, #tpu.memory_space<vmem>>, vector<128x8xf32>
    %36 = vector.broadcast %34 : vector<128x1xf32> to vector<128x8xf32>
    %37 = arith.mulf %35, %36 : vector<128x8xf32>
    %c128_i32 = arith.constant 128 : i32
    %38 = arith.muli %arg0, %c128_i32 : i32
    %39 = tpu.iota {dimensions = array<i32: 1>} : vector<128x128xi32>
    %40 = vector.broadcast %38 : i32 to vector<128x128xi32>
    %41 = arith.addi %40, %39 : vector<128x128xi32>
    %c0_19 = arith.constant 0 : index
    %c0_20 = arith.constant 0 : index
    %42 = vector.load %arg9[%c0_19, %c0_20] : memref<128x1xi32, #tpu.memory_space<vmem>>, vector<128x1xi32>
    %43 = vector.broadcast %42 : vector<128x1xi32> to vector<128x128xi32>
    %44 = arith.cmpi eq, %43, %41 : vector<128x128xi32>
    %45 = arith.extui %44 : vector<128x128xi1> to vector<128x128xi32>
    %46 = arith.sitofp %45 : vector<128x128xi32> to vector<128x128xf32>
    %c0_21 = arith.constant 0 : index
    %c0_22 = arith.constant 0 : index
    %47 = vector.load %arg12[%c0_21, %c0_22] : memref<8x128xf32, #tpu.memory_space<vmem>>, vector<8x128xf32>
    %cst_23 = arith.constant dense<0.000000e+00> : vector<8x128xf32>
    %48 = tpu.matmul %37, %46, %cst_23 {dimension_numbers = #tpu.dot_dimension_numbers<[0], [0], [1], [1], [0, 1, 1, 1], [], []>} : vector<128x8xf32>, vector<128x128xf32>, vector<8x128xf32> -> vector<8x128xf32>
    %49 = arith.addf %47, %48 : vector<8x128xf32>
    %c0_24 = arith.constant 0 : index
    %c0_25 = arith.constant 0 : index
    %50 = vector.load %arg12[%c0_24, %c0_25] : memref<8x128xf32, #tpu.memory_space<vmem>>, vector<8x128xf32>
    tpu.vector_store %arg12[%c0_24, %c0_25], %49 {strides = array<i32>} : memref<8x128xf32, #tpu.memory_space<vmem>>, vector<8x128xf32>,
    %c0_i32_26 = arith.constant 0 : i32
    %51 = arith.cmpi eq, %arg1, %c0_i32_26 : i32
    %52 = arith.extui %51 : i1 to i32
    %c0_i32_27 = arith.constant 0 : i32
    %53 = arith.cmpi ne, %52, %c0_i32_27 : i32
    scf.if %53 {
      %c0_28 = arith.constant 0 : index
      %c0_29 = arith.constant 0 : index
      %54 = vector.load %arg12[%c0_28, %c0_29] : memref<8x128xf32, #tpu.memory_space<vmem>>, vector<8x128xf32>
      %cst_30 = arith.constant 0.00999999977 : f32
      %55 = vector.broadcast %cst_30 : f32 to vector<8x128xf32>
      %56 = arith.mulf %54, %55 : vector<8x128xf32>
      %c0_31 = arith.constant 0 : index
      %c0_32 = arith.constant 0 : index
      %57 = vector.load %arg10[%c0_31, %c0_32] : memref<8x128xf32, #tpu.memory_space<vmem>>, vector<8x128xf32>
      %58 = arith.addf %57, %56 : vector<8x128xf32>
      %c0_33 = arith.constant 0 : index
      %c0_34 = arith.constant 0 : index
      %59 = vector.load %arg11[%c0_33, %c0_34] : memref<8x128xf32, #tpu.memory_space<vmem>>, vector<8x128xf32>
      tpu.vector_store %arg11[%c0_33, %c0_34], %58 {strides = array<i32>} : memref<8x128xf32, #tpu.memory_space<vmem>>, vector<8x128xf32>,
    } else {
    }
    return
  }
  func.func @transform_0(%arg0: i32, %arg1: i32) -> (i32, i32) {
    %c0_i32 = arith.constant 0 : i32
    %c0_i32_0 = arith.constant 0 : i32
    return %arg1, %c0_i32 : i32, i32
  }
  func.func @transform_1(%arg0: i32, %arg1: i32) -> (i32, i32) {
    %c0_i32 = arith.constant 0 : i32
    %c0_i32_0 = arith.constant 0 : i32
    %c0_i32_1 = arith.constant 0 : i32
    return %c0_i32, %c0_i32_0 : i32, i32
  }
  func.func @transform_2(%arg0: i32, %arg1: i32) -> (i32, i32) {
    %c0_i32 = arith.constant 0 : i32
    %c0_i32_0 = arith.constant 0 : i32
    %c0_i32_1 = arith.constant 0 : i32
    return %c0_i32, %c0_i32_0 : i32, i32
  }
  func.func @transform_3(%arg0: i32, %arg1: i32) -> (i32, i32) {
    %c0_i32 = arith.constant 0 : i32
    %c0_i32_0 = arith.constant 0 : i32
    %c0_i32_1 = arith.constant 0 : i32
    return %c0_i32, %c0_i32_0 : i32, i32
  }
  func.func @transform_4(%arg0: i32, %arg1: i32) -> (i32, i32) {
    %c0_i32 = arith.constant 0 : i32
    %c0_i32_0 = arith.constant 0 : i32
    %c0_i32_1 = arith.constant 0 : i32
    return %c0_i32, %c0_i32_0 : i32, i32
  }
  func.func @transform_5(%arg0: i32, %arg1: i32) -> (i32, i32) {
    %c0_i32 = arith.constant 0 : i32
    %c0_i32_0 = arith.constant 0 : i32
    %c0_i32_1 = arith.constant 0 : i32
    return %c0_i32, %c0_i32_0 : i32, i32
  }
  func.func @transform_6(%arg0: i32, %arg1: i32) -> (i32, i32) {
    %c0_i32 = arith.constant 0 : i32
    %c0_i32_0 = arith.constant 0 : i32
    return %arg1, %c0_i32 : i32, i32
  }
  func.func @transform_7(%arg0: i32, %arg1: i32) -> (i32, i32) {
    %c0_i32 = arith.constant 0 : i32
    %c0_i32_0 = arith.constant 0 : i32
    return %arg1, %c0_i32 : i32, i32
  }
  func.func @transform_8(%arg0: i32, %arg1: i32) -> (i32, i32) {
    %c0_i32 = arith.constant 0 : i32
    %c0_i32_0 = arith.constant 0 : i32
    return %c0_i32, %arg0 : i32, i32
  }
  func.func @transform_9(%arg0: i32, %arg1: i32) -> (i32, i32) {
    %c0_i32 = arith.constant 0 : i32
    %c0_i32_0 = arith.constant 0 : i32
    return %c0_i32, %arg0 : i32, i32
  }
}

</mosaic_0001>

<llo_original>
// kernel: equivariant_update.1
$region0: #{equivariant_update.1}
  #allocation0 [shape = 'u32[]', space=smem, size = 0x4, offset = 0x4, fixed_abs, tag = 'smem constant byte address 0x4 - core index']
  #allocation1 [shape = 'u32[144,128]{1,0:T(1,128)}', space=vmem, size = 0x12000, scoped, tag = 'internal scratch']
  #allocation2 [shape = 'f32[8,128]{1,0:T(8,128)}', space=vmem, size = 0x1000, scoped, tag = 'scratch operand']
  %s0 = inlined_call_operand.vmem [shape: bf16[128,128], index: 0, kind: input, shape index: {}]
  %s1 = inlined_call_operand.vmem [shape: bf16[128,32], index: 1, kind: input, shape index: {}]
  %s2 = inlined_call_operand.vmem [shape: f32[1,32], index: 2, kind: input, shape index: {}]
  %s3 = inlined_call_operand.vmem [shape: bf16[32,32], index: 3, kind: input, shape index: {}]
  %s4 = inlined_call_operand.vmem [shape: f32[1,32], index: 4, kind: input, shape index: {}]
  %s5 = inlined_call_operand.vmem [shape: f32[1,32], index: 5, kind: input, shape index: {}]
  %s6 = inlined_call_operand.vmem [shape: f32[128,8], index: 6, kind: input, shape index: {}]
  %s7 = inlined_call_operand.vmem [shape: s32[128,1], index: 7, kind: input, shape index: {}]
  %s8 = inlined_call_operand.vmem [shape: f32[8,128], index: 8, kind: input, shape index: {}, may-alias: {8,9}]
  %s9 = inlined_call_operand.vmem [shape: f32[8,128], index: 9, kind: output, shape index: {}, may-alias: {8,9}]
  %s10 = sld [smem:[#allocation0]]
  $region54: #{equivariant_update.1} parent=0
    _
  %s12 = ssub.s32 1, %s10
  %s13 = scalar_select 0, %s12, %s10
  // Predicated region
  $region2: #{equivariant_update.1} parent=0 // pred_check
    _
  $region3: #{equivariant_update.1} parent=0 // pred_check_branch
    %15 = sbr.rel (0) target = $region5
  $region4: #{equivariant_update.1} parent=0 // pred_region
    _
  $region5: #{equivariant_update.1} parent=0 // pred_fallthru
    _
  // Predicated region
  $region6: #{equivariant_update.1} parent=0 // pred_check
    _
  $region7: #{equivariant_update.1} parent=0 // pred_check_branch
    %17 = sbr.rel (0) target = $region9
  $region8: #{equivariant_update.1} parent=0 // pred_region
    _
  $region9: #{equivariant_update.1} parent=0 // pred_fallthru
    _
  // Predicated region
  $region10: #{equivariant_update.1} parent=0 // pred_check
    _
  $region11: #{equivariant_update.1} parent=0 // pred_check_branch
    %19 = sbr.rel (0) target = $region13
  $region12: #{equivariant_update.1} parent=0 // pred_region
    _
  $region13: #{equivariant_update.1} parent=0 // pred_fallthru
    _
  // Predicated region
  $region14: #{equivariant_update.1} parent=0 // pred_check
    _
  $region15: #{equivariant_update.1} parent=0 // pred_check_branch
    %21 = sbr.rel (0) target = $region17
  $region16: #{equivariant_update.1} parent=0 // pred_region
    _
  $region17: #{equivariant_update.1} parent=0 // pred_fallthru
    _
  // Predicated region
  $region18: #{equivariant_update.1} parent=0 // pred_check
    _
  $region19: #{equivariant_update.1} parent=0 // pred_check_branch
    %23 = sbr.rel (0) target = $region21
  $region20: #{equivariant_update.1} parent=0 // pred_region
    _
  $region21: #{equivariant_update.1} parent=0 // pred_fallthru
    _
  // Predicated region
  $region22: #{equivariant_update.1} parent=0 // pred_check
    _
  $region23: #{equivariant_update.1} parent=0 // pred_check_branch
    %25 = sbr.rel (0) target = $region25
  $region24: #{equivariant_update.1} parent=0 // pred_region
    _
  $region25: #{equivariant_update.1} parent=0 // pred_fallthru
    _
  // Predicated region
  $region26: #{equivariant_update.1} parent=0 // pred_check
    _
  $region27: #{equivariant_update.1} parent=0 // pred_check_branch
    %27 = sbr.rel (0) target = $region29
  $region28: #{equivariant_update.1} parent=0 // pred_region
    _
  $region29: #{equivariant_update.1} parent=0 // pred_fallthru
    _
  // Predicated region
  $region30: #{equivariant_update.1} parent=0 // pred_check
    _
  $region31: #{equivariant_update.1} parent=0 // pred_check_branch
    %29 = sbr.rel (0) target = $region33
  $region32: #{equivariant_update.1} parent=0 // pred_region
    _
  $region33: #{equivariant_update.1} parent=0 // pred_fallthru
    _
  // Predicated region
  $region34: #{equivariant_update.1} parent=0 // pred_check
    _
  $region35: #{equivariant_update.1} parent=0 // pred_check_branch
    %31 = sbr.rel (0) target = $region37
  $region36: #{equivariant_update.1} parent=0 // pred_region
    _
  $region37: #{equivariant_update.1} parent=0 // pred_fallthru
    _
  %p33 = scmp.eq.s32.totalorder 0, 0
  // Predicated region
  $region38: #{equivariant_update.1} parent=0 // pred_check
    %p34 = pneg %p33
  $region39: #{equivariant_update.1} parent=0 // pred_check_branch
    %36 = sbr.rel (%p34) target = $region41
  $region40: #{equivariant_update.1} parent=0 // pred_region
    %37 = vst [vmem:[#allocation2] sm:$0xff] 0.0
  $region41: #{equivariant_update.1} parent=0 // pred_fallthru
    _
  %v38 = vld [vmem:[%s0] sm:$0xf]
  %v39 = vld [vmem:[%s0 + $0x4] sm:$0xf]
  %v40 = vld [vmem:[%s0 + $0x8] sm:$0xf]
  %v41 = vld [vmem:[%s0 + $0xc] sm:$0xf]
  %v42 = vld [vmem:[%s0 + $0x10] sm:$0xf]
  %v43 = vld [vmem:[%s0 + $0x14] sm:$0xf]
  %v44 = vld [vmem:[%s0 + $0x18] sm:$0xf]
  %v45 = vld [vmem:[%s0 + $0x1c] sm:$0xf]
  %v46 = vld [vmem:[%s0 + $0x20] sm:$0xf]
  %v47 = vld [vmem:[%s0 + $0x24] sm:$0xf]
  %v48 = vld [vmem:[%s0 + $0x28] sm:$0xf]
  %v49 = vld [vmem:[%s0 + $0x2c] sm:$0xf]
  %v50 = vld [vmem:[%s0 + $0x30] sm:$0xf]
  %v51 = vld [vmem:[%s0 + $0x34] sm:$0xf]
  %v52 = vld [vmem:[%s0 + $0x38] sm:$0xf]
  %v53 = vld [vmem:[%s0 + $0x3c] sm:$0xf]
  %v54 = vld [vmem:[%s1] sm:$0xf]
  %v55 = vld [vmem:[%s1 + $0x4] sm:$0xf]
  %v56 = vld [vmem:[%s1 + $0x8] sm:$0xf]
  %v57 = vld [vmem:[%s1 + $0xc] sm:$0xf]
  %v58 = vld [vmem:[%s1 + $0x10] sm:$0xf]
  %v59 = vld [vmem:[%s1 + $0x14] sm:$0xf]
  %v60 = vld [vmem:[%s1 + $0x18] sm:$0xf]
  %v61 = vld [vmem:[%s1 + $0x1c] sm:$0xf]
  %v62 = vld [vmem:[%s1 + $0x20] sm:$0xf]
  %v63 = vld [vmem:[%s1 + $0x24] sm:$0xf]
  %v64 = vld [vmem:[%s1 + $0x28] sm:$0xf]
  %v65 = vld [vmem:[%s1 + $0x2c] sm:$0xf]
  %v66 = vld [vmem:[%s1 + $0x30] sm:$0xf]
  %v67 = vld [vmem:[%s1 + $0x34] sm:$0xf]
  %v68 = vld [vmem:[%s1 + $0x38] sm:$0xf]
  %v69 = vld [vmem:[%s1 + $0x3c] sm:$0xf]
  %v70 = vld [vmem:[%s2] sm:$0x1]
  %v72 = vlaneseq
  %v73 = vshrl.u32 %v72, 7
  %v74 = vsub.s32 0, %v73
  %v75 = vrot.slane %v70, %v74
  %v93 = vunpack.c.l.b16 %v38
  %v94 = vunpack.c.l.b16 %v39
  %v95 = vunpack.c.l.b16 %v40
  %v96 = vunpack.c.l.b16 %v41
  %v97 = vunpack.c.l.b16 %v42
  %v98 = vunpack.c.l.b16 %v43
  %v99 = vunpack.c.l.b16 %v44
  %v100 = vunpack.c.l.b16 %v45
  %v101 = vunpack.c.l.b16 %v46
  %v102 = vunpack.c.l.b16 %v47
  %v103 = vunpack.c.l.b16 %v48
  %v104 = vunpack.c.l.b16 %v49
  %v105 = vunpack.c.l.b16 %v50
  %v106 = vunpack.c.l.b16 %v51
  %v107 = vunpack.c.l.b16 %v52
  %v108 = vunpack.c.l.b16 %v53
  %v109 = vpack.c.b16 %v94, %v93
  %v110 = vpack.c.b16 %v96, %v95
  %v111 = vpack.c.b16 %v98, %v97
  %v112 = vpack.c.b16 %v100, %v99
  %v113 = vpack.c.b16 %v102, %v101
  %v114 = vpack.c.b16 %v104, %v103
  %v115 = vpack.c.b16 %v106, %v105
  %v116 = vpack.c.b16 %v108, %v107
  %v141 = vunpack.c.l.b16 %v54
  %v142 = vunpack.c.l.b16 %v55
  %v143 = vunpack.c.l.b16 %v56
  %v144 = vunpack.c.l.b16 %v57
  %v145 = vunpack.c.l.b16 %v58
  %v146 = vunpack.c.l.b16 %v59
  %v147 = vunpack.c.l.b16 %v60
  %v148 = vunpack.c.l.b16 %v61
  %v149 = vunpack.c.l.b16 %v62
  %v150 = vunpack.c.l.b16 %v63
  %v151 = vunpack.c.l.b16 %v64
  %v152 = vunpack.c.l.b16 %v65
  %v153 = vunpack.c.l.b16 %v66
  %v154 = vunpack.c.l.b16 %v67
  %v155 = vunpack.c.l.b16 %v68
  %v156 = vunpack.c.l.b16 %v69
  %v157 = vpack.c.b16 %v142, %v141
  %v158 = vpack.c.b16 %v144, %v143
  %v159 = vpack.c.b16 %v146, %v145
  %v160 = vpack.c.b16 %v148, %v147
  %v161 = vpack.c.b16 %v150, %v149
  %v162 = vpack.c.b16 %v152, %v151
  %v163 = vpack.c.b16 %v154, %v153
  %v164 = vpack.c.b16 %v156, %v155
  %173 = vmatprep.subr.bf16.mxu0 0
  %174 = vmatpush1.bf16.msra.mxu0 %v157
  %175 = vmatprep.subr.bf16.mxu0 0
  %176 = vmatpush1.bf16.msra.mxu0 %v158
  %177 = vmatprep.subr.bf16.mxu0 0
  %178 = vmatpush1.bf16.msra.mxu0 %v159
  %179 = vmatprep.subr.bf16.mxu0 0
  %180 = vmatpush1.bf16.msra.mxu0 %v160
  %181 = vmatprep.subr.bf16.mxu0 0
  %182 = vmatpush1.bf16.msra.mxu0 %v161
  %183 = vmatprep.subr.bf16.mxu0 0
  %184 = vmatpush1.bf16.msra.mxu0 %v162
  %185 = vmatprep.subr.bf16.mxu0 0
  %186 = vmatpush1.bf16.msra.mxu0 %v163
  %187 = vmatprep.subr.bf16.mxu0 0
  %188 = vmatpush1.bf16.msra.mxu0 %v164
  %189 = vmatprep.subr.bf16.mxu0 0
  %190 = vmatpush1.bf16.msra.mxu0 0
  %191 = vmatprep.subr.bf16.mxu0 0
  %192 = vmatpush1.bf16.msra.mxu0 0
  %193 = vmatprep.subr.bf16.mxu0 0
  %194 = vmatpush1.bf16.msra.mxu0 0
  %195 = vmatprep.subr.bf16.mxu0 0
  %196 = vmatpush1.bf16.msra.mxu0 0
  %197 = vmatprep.subr.bf16.mxu0 0
  %198 = vmatpush1.bf16.msra.mxu0 0
  %199 = vmatprep.subr.bf16.mxu0 0
  %200 = vmatpush1.bf16.msra.mxu0 0
  %201 = vmatprep.subr.bf16.mxu0 0
  %202 = vmatpush1.bf16.msra.mxu0 0
  %203 = vmatprep.subr.bf16.mxu0 0
  %204 = vmatpush1.bf16.msra.mxu0 0
  %205 = vmatprep.mubr.bf16.mxu0 0
  %206 = vmatmul.mubr.bf16.gmra.mrb[0].mxu0 %v109
  %v207 = vpop.f32.mrb[0].mxu0
  %v208 = vadd.f32 %v75, %v207
  %v209 = vpop.f32.mrb[0].mxu0
  %v210 = vpop.f32.mrb[0].mxu0
  %v211 = vadd.f32 %v75, %v210
  %v212 = vpop.f32.mrb[0].mxu0
  %213 = vmatprep.mubr.bf16.mxu0 0
  %214 = vmatmul.mubr.bf16.gmra.mrb[0].mxu0 %v110
  %v215 = vpop.f32.mrb[0].mxu0
  %v216 = vadd.f32 %v75, %v215
  %v217 = vpop.f32.mrb[0].mxu0
  %v218 = vpop.f32.mrb[0].mxu0
  %v219 = vadd.f32 %v75, %v218
  %v220 = vpop.f32.mrb[0].mxu0
  %221 = vmatprep.mubr.bf16.mxu0 0
  %222 = vmatmul.mubr.bf16.gmra.mrb[0].mxu0 %v111
  %v223 = vpop.f32.mrb[0].mxu0
  %v224 = vadd.f32 %v75, %v223
  %v225 = vpop.f32.mrb[0].mxu0
  %v226 = vpop.f32.mrb[0].mxu0
  %v227 = vadd.f32 %v75, %v226
  %v228 = vpop.f32.mrb[0].mxu0
  %229 = vmatprep.mubr.bf16.mxu0 0
  %230 = vmatmul.mubr.bf16.gmra.mrb[0].mxu0 %v112
  %v231 = vpop.f32.mrb[0].mxu0
  %v232 = vadd.f32 %v75, %v231
  %v233 = vpop.f32.mrb[0].mxu0
  %v234 = vpop.f32.mrb[0].mxu0
  %v235 = vadd.f32 %v75, %v234
  %v236 = vpop.f32.mrb[0].mxu0
  %237 = vmatprep.mubr.bf16.mxu0 0
  %238 = vmatmul.mubr.bf16.gmra.mrb[0].mxu0 %v113
  %v239 = vpop.f32.mrb[0].mxu0
  %v240 = vadd.f32 %v75, %v239
  %v241 = vpop.f32.mrb[0].mxu0
  %v242 = vpop.f32.mrb[0].mxu0
  %v243 = vadd.f32 %v75, %v242
  %v244 = vpop.f32.mrb[0].mxu0
  %245 = vmatprep.mubr.bf16.mxu0 0
  %246 = vmatmul.mubr.bf16.gmra.mrb[0].mxu0 %v114
  %v247 = vpop.f32.mrb[0].mxu0
  %v248 = vadd.f32 %v75, %v247
  %v249 = vpop.f32.mrb[0].mxu0
  %v250 = vpop.f32.mrb[0].mxu0
  %v251 = vadd.f32 %v75, %v250
  %v252 = vpop.f32.mrb[0].mxu0
  %253 = vmatprep.mubr.bf16.mxu0 0
  %254 = vmatmul.mubr.bf16.gmra.mrb[0].mxu0 %v115
  %v255 = vpop.f32.mrb[0].mxu0
  %v256 = vadd.f32 %v75, %v255
  %v257 = vpop.f32.mrb[0].mxu0
  %v258 = vpop.f32.mrb[0].mxu0
  %v259 = vadd.f32 %v75, %v258
  %v260 = vpop.f32.mrb[0].mxu0
  %261 = vmatprep.mubr.bf16.mxu0 0
  %262 = vmatmul.mubr.bf16.gmra.mrb[0].mxu0 %v116
  %v263 = vpop.f32.mrb[0].mxu0
  %v264 = vadd.f32 %v75, %v263
  %v265 = vpop.f32.mrb[0].mxu0
  %v266 = vpop.f32.mrb[0].mxu0
  %v267 = vadd.f32 %v75, %v266
  %v268 = vpop.f32.mrb[0].mxu0
  %269 = vdwg.mxu0
  %v270 = vxor.u32 %v208, 2147483648
  %v271 = vxor.u32 %v211, 2147483648
  %v272 = vxor.u32 %v216, 2147483648
  %v273 = vxor.u32 %v219, 2147483648
  %v274 = vxor.u32 %v224, 2147483648
  %v275 = vxor.u32 %v227, 2147483648
  %v276 = vxor.u32 %v232, 2147483648
  %v277 = vxor.u32 %v235, 2147483648
  %v278 = vxor.u32 %v240, 2147483648
  %v279 = vxor.u32 %v243, 2147483648
  %v280 = vxor.u32 %v248, 2147483648
  %v281 = vxor.u32 %v251, 2147483648
  %v282 = vxor.u32 %v256, 2147483648
  %v283 = vxor.u32 %v259, 2147483648
  %v284 = vxor.u32 %v264, 2147483648
  %v285 = vxor.u32 %v267, 2147483648
  %v286 = vmul.f32 %v270, 1.442695
  %v287 = vpow.pop %v286
  %v288 = vmul.f32 %v271, 1.442695
  %v289 = vpow.pop %v288
  %v290 = vmul.f32 %v272, 1.442695
  %v291 = vpow.pop %v290
  %v292 = vmul.f32 %v273, 1.442695
  %v293 = vpow.pop %v292
  %v294 = vmul.f32 %v274, 1.442695
  %v295 = vpow.pop %v294
  %v296 = vmul.f32 %v275, 1.442695
  %v297 = vpow.pop %v296
  %v298 = vmul.f32 %v276, 1.442695
  %v299 = vpow.pop %v298
  %v300 = vmul.f32 %v277, 1.442695
  %v301 = vpow.pop %v300
  %v302 = vmul.f32 %v278, 1.442695
  %v303 = vpow.pop %v302
  %v304 = vmul.f32 %v279, 1.442695
  %v305 = vpow.pop %v304
  %v306 = vmul.f32 %v280, 1.442695
  %v307 = vpow.pop %v306
  %v308 = vmul.f32 %v281, 1.442695
  %v309 = vpow.pop %v308
  %v310 = vmul.f32 %v282, 1.442695
  %v311 = vpow.pop %v310
  %v312 = vmul.f32 %v283, 1.442695
  %v313 = vpow.pop %v312
  %v314 = vmul.f32 %v284, 1.442695
  %v315 = vpow.pop %v314
  %v316 = vmul.f32 %v285, 1.442695
  %v317 = vpow.pop %v316
  %v318 = vadd.f32 %v287, 1.0
  %v319 = vadd.f32 %v289, 1.0
  %v320 = vadd.f32 %v291, 1.0
  %v321 = vadd.f32 %v293, 1.0
  %v322 = vadd.f32 %v295, 1.0
  %v323 = vadd.f32 %v297, 1.0
  %v324 = vadd.f32 %v299, 1.0
  %v325 = vadd.f32 %v301, 1.0
  %v326 = vadd.f32 %v303, 1.0
  %v327 = vadd.f32 %v305, 1.0
  %v328 = vadd.f32 %v307, 1.0
  %v329 = vadd.f32 %v309, 1.0
  %v330 = vadd.f32 %v311, 1.0
  %v331 = vadd.f32 %v313, 1.0
  %v332 = vadd.f32 %v315, 1.0
  %v333 = vadd.f32 %v317, 1.0
  %v334 = vrcp.pop %v318
  %v335 = vmul.f32 1.0, %v334
  %v336 = vrcp.pop %v319
  %v337 = vmul.f32 1.0, %v336
  %v338 = vrcp.pop %v320
  %v339 = vmul.f32 1.0, %v338
  %v340 = vrcp.pop %v321
  %v341 = vmul.f32 1.0, %v340
  %v342 = vrcp.pop %v322
  %v343 = vmul.f32 1.0, %v342
  %v344 = vrcp.pop %v323
  %v345 = vmul.f32 1.0, %v344
  %v346 = vrcp.pop %v324
  %v347 = vmul.f32 1.0, %v346
  %v348 = vrcp.pop %v325
  %v349 = vmul.f32 1.0, %v348
  %v350 = vrcp.pop %v326
  %v351 = vmul.f32 1.0, %v350
  %v352 = vrcp.pop %v327
  %v353 = vmul.f32 1.0, %v352
  %v354 = vrcp.pop %v328
  %v355 = vmul.f32 1.0, %v354
  %v356 = vrcp.pop %v329
  %v357 = vmul.f32 1.0, %v356
  %v358 = vrcp.pop %v330
  %v359 = vmul.f32 1.0, %v358
  %v360 = vrcp.pop %v331
  %v361 = vmul.f32 1.0, %v360
  %v362 = vrcp.pop %v332
  %v363 = vmul.f32 1.0, %v362
  %v364 = vrcp.pop %v333
  %v365 = vmul.f32 1.0, %v364
  %v366 = vmul.f32 %v208, %v335
  %v367 = vmul.f32 %v211, %v337
  %v368 = vmul.f32 %v216, %v339
  %v369 = vmul.f32 %v219, %v341
  %v370 = vmul.f32 %v224, %v343
  %v371 = vmul.f32 %v227, %v345
  %v372 = vmul.f32 %v232, %v347
  %v373 = vmul.f32 %v235, %v349
  %v374 = vmul.f32 %v240, %v351
  %v375 = vmul.f32 %v243, %v353
  %v376 = vmul.f32 %v248, %v355
  %v377 = vmul.f32 %v251, %v357
  %v378 = vmul.f32 %v256, %v359
  %v379 = vmul.f32 %v259, %v361
  %v380 = vmul.f32 %v264, %v363
  %v381 = vmul.f32 %v267, %v365
  %v382 = vpack.c.bf16 %v367, %v366
  %v383 = vpack.c.bf16 %v369, %v368
  %v384 = vpack.c.bf16 %v371, %v370
  %v385 = vpack.c.bf16 %v373, %v372
  %v386 = vpack.c.bf16 %v375, %v374
  %v387 = vpack.c.bf16 %v377, %v376
  %v388 = vpack.c.bf16 %v379, %v378
  %v389 = vpack.c.bf16 %v381, %v380
  %v390 = vld [vmem:[%s3] sm:$0xf]
  %v391 = vld [vmem:[%s3 + $0x4] sm:$0xf]
  %v392 = vld [vmem:[%s3 + $0x8] sm:$0xf]
  %v393 = vld [vmem:[%s3 + $0xc] sm:$0xf]
  %v394 = vld [vmem:[%s4] sm:$0x1]
  %v396 = vlaneseq
  %v397 = vshrl.u32 %v396, 7
  %v398 = vsub.s32 0, %v397
  %v399 = vrot.slane %v394, %v398
  %v405 = vunpack.c.l.b16 %v390
  %v406 = vunpack.c.l.b16 %v391
  %v407 = vunpack.c.l.b16 %v392
  %v408 = vunpack.c.l.b16 %v393
  %v409 = vpack.c.b16 %v406, %v405
  %v410 = vpack.c.b16 %v408, %v407
  %vm413 = vcmask 261120
  %v415 = vsel %vm413, %v382, 0
  %v418 = vsel %vm413, %v383, 0
  %v421 = vsel %vm413, %v384, 0
  %v424 = vsel %vm413, %v385, 0
  %v427 = vsel %vm413, %v386, 0
  %v430 = vsel %vm413, %v387, 0
  %v433 = vsel %vm413, %v388, 0
  %v436 = vsel %vm413, %v389, 0
  %438 = vmatprep.subr.bf16.mxu0 0
  %439 = vmatpush1.bf16.msra.mxu0 %v409
  %440 = vmatprep.subr.bf16.mxu0 0
  %441 = vmatpush1.bf16.msra.mxu0 %v410
  %442 = vmatprep.subr.bf16.mxu0 0
  %443 = vmatpush1.bf16.msra.mxu0 0
  %444 = vmatprep.subr.bf16.mxu0 0
  %445 = vmatpush1.bf16.msra.mxu0 0
  %446 = vmatprep.subr.bf16.mxu0 0
  %447 = vmatpush1.bf16.msra.mxu0 0
  %448 = vmatprep.subr.bf16.mxu0 0
  %449 = vmatpush1.bf16.msra.mxu0 0
  %450 = vmatprep.subr.bf16.mxu0 0
  %451 = vmatpush1.bf16.msra.mxu0 0
  %452 = vmatprep.subr.bf16.mxu0 0
  %453 = vmatpush1.bf16.msra.mxu0 0
  %454 = vmatprep.subr.bf16.mxu0 0
  %455 = vmatpush1.bf16.msra.mxu0 0
  %456 = vmatprep.subr.bf16.mxu0 0
  %457 = vmatpush1.bf16.msra.mxu0 0
  %458 = vmatprep.subr.bf16.mxu0 0
  %459 = vmatpush1.bf16.msra.mxu0 0
  %460 = vmatprep.subr.bf16.mxu0 0
  %461 = vmatpush1.bf16.msra.mxu0 0
  %462 = vmatprep.subr.bf16.mxu0 0
  %463 = vmatpush1.bf16.msra.mxu0 0
  %464 = vmatprep.subr.bf16.mxu0 0
  %465 = vmatpush1.bf16.msra.mxu0 0
  %466 = vmatprep.subr.bf16.mxu0 0
  %467 = vmatpush1.bf16.msra.mxu0 0
  %468 = vmatprep.subr.bf16.mxu0 0
  %469 = vmatpush1.bf16.msra.mxu0 0
  %470 = vmatprep.mubr.bf16.mxu0 0
  %471 = vmatmul.mubr.bf16.gmra.mrb[0].mxu0 %v415
  %v472 = vpop.f32.mrb[0].mxu0
  %v473 = vadd.f32 %v399, %v472
  %v474 = vpop.f32.mrb[0].mxu0
  %v475 = vpop.f32.mrb[0].mxu0
  %v476 = vadd.f32 %v399, %v475
  %v477 = vpop.f32.mrb[0].mxu0
  %478 = vmatprep.mubr.bf16.mxu0 0
  %479 = vmatmul.mubr.bf16.gmra.mrb[0].mxu0 %v418
  %v480 = vpop.f32.mrb[0].mxu0
  %v481 = vadd.f32 %v399, %v480
  %v482 = vpop.f32.mrb[0].mxu0
  %v483 = vpop.f32.mrb[0].mxu0
  %v484 = vadd.f32 %v399, %v483
  %v485 = vpop.f32.mrb[0].mxu0
  %486 = vmatprep.mubr.bf16.mxu0 0
  %487 = vmatmul.mubr.bf16.gmra.mrb[0].mxu0 %v421
  %v488 = vpop.f32.mrb[0].mxu0
  %v489 = vadd.f32 %v399, %v488
  %v490 = vpop.f32.mrb[0].mxu0
  %v491 = vpop.f32.mrb[0].mxu0
  %v492 = vadd.f32 %v399, %v491
  %v493 = vpop.f32.mrb[0].mxu0
  %494 = vmatprep.mubr.bf16.mxu0 0
  %495 = vmatmul.mubr.bf16.gmra.mrb[0].mxu0 %v424
  %v496 = vpop.f32.mrb[0].mxu0
  %v497 = vadd.f32 %v399, %v496
  %v498 = vpop.f32.mrb[0].mxu0
  %v499 = vpop.f32.mrb[0].mxu0
  %v500 = vadd.f32 %v399, %v499
  %v501 = vpop.f32.mrb[0].mxu0
  %502 = vmatprep.mubr.bf16.mxu0 0
  %503 = vmatmul.mubr.bf16.gmra.mrb[0].mxu0 %v427
  %v504 = vpop.f32.mrb[0].mxu0
  %v505 = vadd.f32 %v399, %v504
  %v506 = vpop.f32.mrb[0].mxu0
  %v507 = vpop.f32.mrb[0].mxu0
  %v508 = vadd.f32 %v399, %v507
  %v509 = vpop.f32.mrb[0].mxu0
  %510 = vmatprep.mubr.bf16.mxu0 0
  %511 = vmatmul.mubr.bf16.gmra.mrb[0].mxu0 %v430
  %v512 = vpop.f32.mrb[0].mxu0
  %v513 = vadd.f32 %v399, %v512
  %v514 = vpop.f32.mrb[0].mxu0
  %v515 = vpop.f32.mrb[0].mxu0
  %v516 = vadd.f32 %v399, %v515
  %v517 = vpop.f32.mrb[0].mxu0
  %518 = vmatprep.mubr.bf16.mxu0 0
  %519 = vmatmul.mubr.bf16.gmra.mrb[0].mxu0 %v433
  %v520 = vpop.f32.mrb[0].mxu0
  %v521 = vadd.f32 %v399, %v520
  %v522 = vpop.f32.mrb[0].mxu0
  %v523 = vpop.f32.mrb[0].mxu0
  %v524 = vadd.f32 %v399, %v523
  %v525 = vpop.f32.mrb[0].mxu0
  %526 = vmatprep.mubr.bf16.mxu0 0
  %527 = vmatmul.mubr.bf16.gmra.mrb[0].mxu0 %v436
  %v528 = vpop.f32.mrb[0].mxu0
  %v529 = vadd.f32 %v399, %v528
  %v530 = vpop.f32.mrb[0].mxu0
  %v531 = vpop.f32.mrb[0].mxu0
  %v532 = vadd.f32 %v399, %v531
  %v533 = vpop.f32.mrb[0].mxu0
  %534 = vdwg.mxu0
  %v535 = vxor.u32 %v473, 2147483648
  %v536 = vxor.u32 %v476, 2147483648
  %v537 = vxor.u32 %v481, 2147483648
  %v538 = vxor.u32 %v484, 2147483648
  %v539 = vxor.u32 %v489, 2147483648
  %v540 = vxor.u32 %v492, 2147483648
  %v541 = vxor.u32 %v497, 2147483648
  %v542 = vxor.u32 %v500, 2147483648
  %v543 = vxor.u32 %v505, 2147483648
  %v544 = vxor.u32 %v508, 2147483648
  %v545 = vxor.u32 %v513, 2147483648
  %v546 = vxor.u32 %v516, 2147483648
  %v547 = vxor.u32 %v521, 2147483648
  %v548 = vxor.u32 %v524, 2147483648
  %v549 = vxor.u32 %v529, 2147483648
  %v550 = vxor.u32 %v532, 2147483648
  %v551 = vmul.f32 %v535, 1.442695
  %v552 = vpow.pop %v551
  %v553 = vmul.f32 %v536, 1.442695
  %v554 = vpow.pop %v553
  %v555 = vmul.f32 %v537, 1.442695
  %v556 = vpow.pop %v555
  %v557 = vmul.f32 %v538, 1.442695
  %v558 = vpow.pop %v557
  %v559 = vmul.f32 %v539, 1.442695
  %v560 = vpow.pop %v559
  %v561 = vmul.f32 %v540, 1.442695
  %v562 = vpow.pop %v561
  %v563 = vmul.f32 %v541, 1.442695
  %v564 = vpow.pop %v563
  %v565 = vmul.f32 %v542, 1.442695
  %v566 = vpow.pop %v565
  %v567 = vmul.f32 %v543, 1.442695
  %v568 = vpow.pop %v567
  %v569 = vmul.f32 %v544, 1.442695
  %v570 = vpow.pop %v569
  %v571 = vmul.f32 %v545, 1.442695
  %v572 = vpow.pop %v571
  %v573 = vmul.f32 %v546, 1.442695
  %v574 = vpow.pop %v573
  %v575 = vmul.f32 %v547, 1.442695
  %v576 = vpow.pop %v575
  %v577 = vmul.f32 %v548, 1.442695
  %v578 = vpow.pop %v577
  %v579 = vmul.f32 %v549, 1.442695
  %v580 = vpow.pop %v579
  %v581 = vmul.f32 %v550, 1.442695
  %v582 = vpow.pop %v581
  %v583 = vadd.f32 %v552, 1.0
  %v584 = vadd.f32 %v554, 1.0
  %v585 = vadd.f32 %v556, 1.0
  %v586 = vadd.f32 %v558, 1.0
  %v587 = vadd.f32 %v560, 1.0
  %v588 = vadd.f32 %v562, 1.0
  %v589 = vadd.f32 %v564, 1.0
  %v590 = vadd.f32 %v566, 1.0
  %v591 = vadd.f32 %v568, 1.0
  %v592 = vadd.f32 %v570, 1.0
  %v593 = vadd.f32 %v572, 1.0
  %v594 = vadd.f32 %v574, 1.0
  %v595 = vadd.f32 %v576, 1.0
  %v596 = vadd.f32 %v578, 1.0
  %v597 = vadd.f32 %v580, 1.0
  %v598 = vadd.f32 %v582, 1.0
  %v599 = vrcp.pop %v583
  %v600 = vmul.f32 1.0, %v599
  %v601 = vrcp.pop %v584
  %v602 = vmul.f32 1.0, %v601
  %v603 = vrcp.pop %v585
  %v604 = vmul.f32 1.0, %v603
  %v605 = vrcp.pop %v586
  %v606 = vmul.f32 1.0, %v605
  %v607 = vrcp.pop %v587
  %v608 = vmul.f32 1.0, %v607
  %v609 = vrcp.pop %v588
  %v610 = vmul.f32 1.0, %v609
  %v611 = vrcp.pop %v589
  %v612 = vmul.f32 1.0, %v611
  %v613 = vrcp.pop %v590
  %v614 = vmul.f32 1.0, %v613
  %v615 = vrcp.pop %v591
  %v616 = vmul.f32 1.0, %v615
  %v617 = vrcp.pop %v592
  %v618 = vmul.f32 1.0, %v617
  %v619 = vrcp.pop %v593
  %v620 = vmul.f32 1.0, %v619
  %v621 = vrcp.pop %v594
  %v622 = vmul.f32 1.0, %v621
  %v623 = vrcp.pop %v595
  %v624 = vmul.f32 1.0, %v623
  %v625 = vrcp.pop %v596
  %v626 = vmul.f32 1.0, %v625
  %v627 = vrcp.pop %v597
  %v628 = vmul.f32 1.0, %v627
  %v629 = vrcp.pop %v598
  %v630 = vmul.f32 1.0, %v629
  %v631 = vmul.f32 %v473, %v600
  %v632 = vmul.f32 %v476, %v602
  %v633 = vmul.f32 %v481, %v604
  %v634 = vmul.f32 %v484, %v606
  %v635 = vmul.f32 %v489, %v608
  %v636 = vmul.f32 %v492, %v610
  %v637 = vmul.f32 %v497, %v612
  %v638 = vmul.f32 %v500, %v614
  %v639 = vmul.f32 %v505, %v616
  %v640 = vmul.f32 %v508, %v618
  %v641 = vmul.f32 %v513, %v620
  %v642 = vmul.f32 %v516, %v622
  %v643 = vmul.f32 %v521, %v624
  %v644 = vmul.f32 %v524, %v626
  %v645 = vmul.f32 %v529, %v628
  %v646 = vmul.f32 %v532, %v630
  %v647 = vld [vmem:[%s5] sm:$0x1]
  %v649 = vlaneseq
  %v650 = vshrl.u32 %v649, 7
  %v651 = vsub.s32 0, %v650
  %v652 = vrot.slane %v647, %v651
  %v654 = vmul.f32 %v631, %v652
  %v655 = vmul.f32 %v632, %v652
  %v656 = vmul.f32 %v633, %v652
  %v657 = vmul.f32 %v634, %v652
  %v658 = vmul.f32 %v635, %v652
  %v659 = vmul.f32 %v636, %v652
  %v660 = vmul.f32 %v637, %v652
  %v661 = vmul.f32 %v638, %v652
  %v662 = vmul.f32 %v639, %v652
  %v663 = vmul.f32 %v640, %v652
  %v664 = vmul.f32 %v641, %v652
  %v665 = vmul.f32 %v642, %v652
  %v666 = vmul.f32 %v643, %v652
  %v667 = vmul.f32 %v644, %v652
  %v668 = vmul.f32 %v645, %v652
  %v669 = vmul.f32 %v646, %v652
  %v670 = vsel %vm413, %v654, 0.0
  %671 = vadd.xlane.f32.xlu0 %v670
  %v672 = vpop.xlane.xlu0 %671
  %v673 = vsel %vm413, %v655, 0.0
  %674 = vadd.xlane.f32.xlu0 %v673
  %v675 = vpop.xlane.xlu0 %674
  %v676 = vsel %vm413, %v656, 0.0
  %677 = vadd.xlane.f32.xlu0 %v676
  %v678 = vpop.xlane.xlu0 %677
  %v679 = vsel %vm413, %v657, 0.0
  %680 = vadd.xlane.f32.xlu0 %v679
  %v681 = vpop.xlane.xlu0 %680
  %v682 = vsel %vm413, %v658, 0.0
  %683 = vadd.xlane.f32.xlu0 %v682
  %v684 = vpop.xlane.xlu0 %683
  %v685 = vsel %vm413, %v659, 0.0
  %686 = vadd.xlane.f32.xlu0 %v685
  %v687 = vpop.xlane.xlu0 %686
  %v688 = vsel %vm413, %v660, 0.0
  %689 = vadd.xlane.f32.xlu0 %v688
  %v690 = vpop.xlane.xlu0 %689
  %v691 = vsel %vm413, %v661, 0.0
  %692 = vadd.xlane.f32.xlu0 %v691
  %v693 = vpop.xlane.xlu0 %692
  %v694 = vsel %vm413, %v662, 0.0
  %695 = vadd.xlane.f32.xlu0 %v694
  %v696 = vpop.xlane.xlu0 %695
  %v697 = vsel %vm413, %v663, 0.0
  %698 = vadd.xlane.f32.xlu0 %v697
  %v699 = vpop.xlane.xlu0 %698
  %v700 = vsel %vm413, %v664, 0.0
  %701 = vadd.xlane.f32.xlu0 %v700
  %v702 = vpop.xlane.xlu0 %701
  %v703 = vsel %vm413, %v665, 0.0
  %704 = vadd.xlane.f32.xlu0 %v703
  %v705 = vpop.xlane.xlu0 %704
  %v706 = vsel %vm413, %v666, 0.0
  %707 = vadd.xlane.f32.xlu0 %v706
  %v708 = vpop.xlane.xlu0 %707
  %v709 = vsel %vm413, %v667, 0.0
  %710 = vadd.xlane.f32.xlu0 %v709
  %v711 = vpop.xlane.xlu0 %710
  %v712 = vsel %vm413, %v668, 0.0
  %713 = vadd.xlane.f32.xlu0 %v712
  %v714 = vpop.xlane.xlu0 %713
  %v715 = vsel %vm413, %v669, 0.0
  %716 = vadd.xlane.f32.xlu0 %v715
  %v717 = vpop.xlane.xlu0 %716
  %v718 = vtanh.pop %v672
  %v719 = vtanh.pop %v675
  %v720 = vtanh.pop %v678
  %v721 = vtanh.pop %v681
  %v722 = vtanh.pop %v684
  %v723 = vtanh.pop %v687
  %v724 = vtanh.pop %v690
  %v725 = vtanh.pop %v693
  %v726 = vtanh.pop %v696
  %v727 = vtanh.pop %v699
  %v728 = vtanh.pop %v702
  %v729 = vtanh.pop %v705
  %v730 = vtanh.pop %v708
  %v731 = vtanh.pop %v711
  %v732 = vtanh.pop %v714
  %v733 = vtanh.pop %v717
  %v734 = vmul.f32 %v718, 10.0
  %v735 = vmul.f32 %v719, 10.0
  %v736 = vmul.f32 %v720, 10.0
  %v737 = vmul.f32 %v721, 10.0
  %v738 = vmul.f32 %v722, 10.0
  %v739 = vmul.f32 %v723, 10.0
  %v740 = vmul.f32 %v724, 10.0
  %v741 = vmul.f32 %v725, 10.0
  %v742 = vmul.f32 %v726, 10.0
  %v743 = vmul.f32 %v727, 10.0
  %v744 = vmul.f32 %v728, 10.0
  %v745 = vmul.f32 %v729, 10.0
  %v746 = vmul.f32 %v730, 10.0
  %v747 = vmul.f32 %v731, 10.0
  %v748 = vmul.f32 %v732, 10.0
  %v749 = vmul.f32 %v733, 10.0
  %v750 = vld [vmem:[%s6] sm:$0xff]
  %v751 = vld [vmem:[%s6 + $0x8] sm:$0xff]
  %v752 = vld [vmem:[%s6 + $0x10] sm:$0xff]
  %v753 = vld [vmem:[%s6 + $0x18] sm:$0xff]
  %v754 = vld [vmem:[%s6 + $0x20] sm:$0xff]
  %v755 = vld [vmem:[%s6 + $0x28] sm:$0xff]
  %v756 = vld [vmem:[%s6 + $0x30] sm:$0xff]
  %v757 = vld [vmem:[%s6 + $0x38] sm:$0xff]
  %v758 = vld [vmem:[%s6 + $0x40] sm:$0xff]
  %v759 = vld [vmem:[%s6 + $0x48] sm:$0xff]
  %v760 = vld [vmem:[%s6 + $0x50] sm:$0xff]
  %v761 = vld [vmem:[%s6 + $0x58] sm:$0xff]
  %v762 = vld [vmem:[%s6 + $0x60] sm:$0xff]
  %v763 = vld [vmem:[%s6 + $0x68] sm:$0xff]
  %v764 = vld [vmem:[%s6 + $0x70] sm:$0xff]
  %v765 = vld [vmem:[%s6 + $0x78] sm:$0xff]
  %v766 = vmul.f32 %v750, %v734
  %v767 = vmul.f32 %v751, %v735
  %v768 = vmul.f32 %v752, %v736
  %v769 = vmul.f32 %v753, %v737
  %v770 = vmul.f32 %v754, %v738
  %v771 = vmul.f32 %v755, %v739
  %v772 = vmul.f32 %v756, %v740
  %v773 = vmul.f32 %v757, %v741
  %v774 = vmul.f32 %v758, %v742
  %v775 = vmul.f32 %v759, %v743
  %v776 = vmul.f32 %v760, %v744
  %v777 = vmul.f32 %v761, %v745
  %v778 = vmul.f32 %v762, %v746
  %v779 = vmul.f32 %v763, %v747
  %v780 = vmul.f32 %v764, %v748
  %v781 = vmul.f32 %v765, %v749
  %s782 = smul.u32 0, 128
  %v783 = vlaneseq
  %v784 = vand.u32 %v783, 127
  %v785 = vstv %s782
  %v786 = vadd.s32 %v785, %v784
  %v787 = vld [vmem:[%s7] sm:$0xff]
  %v788 = vld [vmem:[%s7 + $0x8] sm:$0xff]
  %v789 = vld [vmem:[%s7 + $0x10] sm:$0xff]
  %v790 = vld [vmem:[%s7 + $0x18] sm:$0xff]
  %v791 = vld [vmem:[%s7 + $0x20] sm:$0xff]
  %v792 = vld [vmem:[%s7 + $0x28] sm:$0xff]
  %v793 = vld [vmem:[%s7 + $0x30] sm:$0xff]
  %v794 = vld [vmem:[%s7 + $0x38] sm:$0xff]
  %v795 = vld [vmem:[%s7 + $0x40] sm:$0xff]
  %v796 = vld [vmem:[%s7 + $0x48] sm:$0xff]
  %v797 = vld [vmem:[%s7 + $0x50] sm:$0xff]
  %v798 = vld [vmem:[%s7 + $0x58] sm:$0xff]
  %v799 = vld [vmem:[%s7 + $0x60] sm:$0xff]
  %v800 = vld [vmem:[%s7 + $0x68] sm:$0xff]
  %v801 = vld [vmem:[%s7 + $0x70] sm:$0xff]
  %v802 = vld [vmem:[%s7 + $0x78] sm:$0xff]
  %803 = vset.pattern.permute.xlu0 0
  %804 = vperm.xlu0 %803, %v787
  %v805 = vpop.permute.xlu0 %804
  %806 = vset.pattern.permute.xlu0 0
  %807 = vperm.xlu0 %806, %v788
  %v808 = vpop.permute.xlu0 %807
  %809 = vset.pattern.permute.xlu0 0
  %810 = vperm.xlu0 %809, %v789
  %v811 = vpop.permute.xlu0 %810
  %812 = vset.pattern.permute.xlu0 0
  %813 = vperm.xlu0 %812, %v790
  %v814 = vpop.permute.xlu0 %813
  %815 = vset.pattern.permute.xlu0 0
  %816 = vperm.xlu0 %815, %v791
  %v817 = vpop.permute.xlu0 %816
  %818 = vset.pattern.permute.xlu0 0
  %819 = vperm.xlu0 %818, %v792
  %v820 = vpop.permute.xlu0 %819
  %821 = vset.pattern.permute.xlu0 0
  %822 = vperm.xlu0 %821, %v793
  %v823 = vpop.permute.xlu0 %822
  %824 = vset.pattern.permute.xlu0 0
  %825 = vperm.xlu0 %824, %v794
  %v826 = vpop.permute.xlu0 %825
  %827 = vset.pattern.permute.xlu0 0
  %828 = vperm.xlu0 %827, %v795
  %v829 = vpop.permute.xlu0 %828
  %830 = vset.pattern.permute.xlu0 0
  %831 = vperm.xlu0 %830, %v796
  %v832 = vpop.permute.xlu0 %831
  %833 = vset.pattern.permute.xlu0 0
  %834 = vperm.xlu0 %833, %v797
  %v835 = vpop.permute.xlu0 %834
  %836 = vset.pattern.permute.xlu0 0
  %837 = vperm.xlu0 %836, %v798
  %v838 = vpop.permute.xlu0 %837
  %839 = vset.pattern.permute.xlu0 0
  %840 = vperm.xlu0 %839, %v799
  %v841 = vpop.permute.xlu0 %840
  %842 = vset.pattern.permute.xlu0 0
  %843 = vperm.xlu0 %842, %v800
  %v844 = vpop.permute.xlu0 %843
  %845 = vset.pattern.permute.xlu0 0
  %846 = vperm.xlu0 %845, %v801
  %v847 = vpop.permute.xlu0 %846
  %848 = vset.pattern.permute.xlu0 0
  %849 = vperm.xlu0 %848, %v802
  %v850 = vpop.permute.xlu0 %849
  %vm851 = vcmp.eq.s32.totalorder %v805, %v786
  %vm852 = vcmp.eq.s32.totalorder %v808, %v786
  %vm853 = vcmp.eq.s32.totalorder %v811, %v786
  %vm854 = vcmp.eq.s32.totalorder %v814, %v786
  %vm855 = vcmp.eq.s32.totalorder %v817, %v786
  %vm856 = vcmp.eq.s32.totalorder %v820, %v786
  %vm857 = vcmp.eq.s32.totalorder %v823, %v786
  %vm858 = vcmp.eq.s32.totalorder %v826, %v786
  %vm859 = vcmp.eq.s32.totalorder %v829, %v786
  %vm860 = vcmp.eq.s32.totalorder %v832, %v786
  %vm861 = vcmp.eq.s32.totalorder %v835, %v786
  %vm862 = vcmp.eq.s32.totalorder %v838, %v786
  %vm863 = vcmp.eq.s32.totalorder %v841, %v786
  %vm864 = vcmp.eq.s32.totalorder %v844, %v786
  %vm865 = vcmp.eq.s32.totalorder %v847, %v786
  %vm866 = vcmp.eq.s32.totalorder %v850, %v786
  %v867 = vsel %vm851, 1, 0
  %v868 = vsel %vm852, 1, 0
  %v869 = vsel %vm853, 1, 0
  %v870 = vsel %vm854, 1, 0
  %v871 = vsel %vm855, 1, 0
  %v872 = vsel %vm856, 1, 0
  %v873 = vsel %vm857, 1, 0
  %v874 = vsel %vm858, 1, 0
  %v875 = vsel %vm859, 1, 0
  %v876 = vsel %vm860, 1, 0
  %v877 = vsel %vm861, 1, 0
  %v878 = vsel %vm862, 1, 0
  %v879 = vsel %vm863, 1, 0
  %v880 = vsel %vm864, 1, 0
  %v881 = vsel %vm865, 1, 0
  %v882 = vsel %vm866, 1, 0
  %v883 = vcvt.s32.f32 %v867
  %v884 = vcvt.s32.f32 %v868
  %v885 = vcvt.s32.f32 %v869
  %v886 = vcvt.s32.f32 %v870
  %v887 = vcvt.s32.f32 %v871
  %v888 = vcvt.s32.f32 %v872
  %v889 = vcvt.s32.f32 %v873
  %v890 = vcvt.s32.f32 %v874
  %v891 = vcvt.s32.f32 %v875
  %v892 = vcvt.s32.f32 %v876
  %v893 = vcvt.s32.f32 %v877
  %v894 = vcvt.s32.f32 %v878
  %v895 = vcvt.s32.f32 %v879
  %v896 = vcvt.s32.f32 %v880
  %v897 = vcvt.s32.f32 %v881
  %v898 = vcvt.s32.f32 %v882
  %v899 = vld [vmem:[#allocation2] sm:$0xff]
  %900 = vxpose.xlu0.b32.start [1/16] %v766, 128
  %901 = vxpose.xlu0.b32.cont [2/16] %v767, 128
  %902 = vxpose.xlu0.b32.cont [3/16] %v768, 128
  %903 = vxpose.xlu0.b32.cont [4/16] %v769, 128
  %904 = vxpose.xlu0.b32.cont [5/16] %v770, 128
  %905 = vxpose.xlu0.b32.cont [6/16] %v771, 128
  %906 = vxpose.xlu0.b32.cont [7/16] %v772, 128
  %907 = vxpose.xlu0.b32.cont [8/16] %v773, 128
  %908 = vxpose.xlu0.b32.cont [9/16] %v774, 128
  %909 = vxpose.xlu0.b32.cont [10/16] %v775, 128
  %910 = vxpose.xlu0.b32.cont [11/16] %v776, 128
  %911 = vxpose.xlu0.b32.cont [12/16] %v777, 128
  %912 = vxpose.xlu0.b32.cont [13/16] %v778, 128
  %913 = vxpose.xlu0.b32.cont [14/16] %v779, 128
  %914 = vxpose.xlu0.b32.cont [15/16] %v780, 128
  %915 = vxpose.xlu0.b32.end [16/16] %v781, 128
  %v916 = vpop.trf.xlu0
  %v917 = vpop.trf.xlu0
  %v918 = vpop.trf.xlu0
  %v919 = vpop.trf.xlu0
  %v920 = vpop.trf.xlu0
  %v921 = vpop.trf.xlu0
  %v922 = vpop.trf.xlu0
  %v923 = vpop.trf.xlu0
  %v924 = vpop.trf.xlu0
  %v925 = vpop.trf.xlu0
  %v926 = vpop.trf.xlu0
  %v927 = vpop.trf.xlu0
  %v928 = vpop.trf.xlu0
  %v929 = vpop.trf.xlu0
  %v930 = vpop.trf.xlu0
  %v931 = vpop.trf.xlu0
  %932 = vmatprep.subr.mxu0 0.0
  %933 = vmatpush1.msra.mxu0 %v883
  %934 = vmatprep.subr.mxu0 0.0
  %935 = vmatpush1.msra.mxu0 %v884
  %936 = vmatprep.subr.mxu0 0.0
  %937 = vmatpush1.msra.mxu0 %v885
  %938 = vmatprep.subr.mxu0 0.0
  %939 = vmatpush1.msra.mxu0 %v886
  %940 = vmatprep.subr.mxu0 0.0
  %941 = vmatpush1.msra.mxu0 %v887
  %942 = vmatprep.subr.mxu0 0.0
  %943 = vmatpush1.msra.mxu0 %v888
  %944 = vmatprep.subr.mxu0 0.0
  %945 = vmatpush1.msra.mxu0 %v889
  %946 = vmatprep.subr.mxu0 0.0
  %947 = vmatpush1.msra.mxu0 %v890
  %948 = vmatprep.subr.mxu0 0.0
  %949 = vmatpush1.msra.mxu0 %v891
  %950 = vmatprep.subr.mxu0 0.0
  %951 = vmatpush1.msra.mxu0 %v892
  %952 = vmatprep.subr.mxu0 0.0
  %953 = vmatpush1.msra.mxu0 %v893
  %954 = vmatprep.subr.mxu0 0.0
  %955 = vmatpush1.msra.mxu0 %v894
  %956 = vmatprep.subr.mxu0 0.0
  %957 = vmatpush1.msra.mxu0 %v895
  %958 = vmatprep.subr.mxu0 0.0
  %959 = vmatpush1.msra.mxu0 %v896
  %960 = vmatprep.subr.mxu0 0.0
  %961 = vmatpush1.msra.mxu0 %v897
  %962 = vmatprep.subr.mxu0 0.0
  %963 = vmatpush1.msra.mxu0 %v898
  %964 = vmatprep.subr.mxu0 0.0
  %965 = vmatpush1.msra.mxu0 0.0
  %966 = vmatprep.subr.mxu0 0.0
  %967 = vmatpush1.msra.mxu0 0.0
  %968 = vmatprep.subr.mxu0 0.0
  %969 = vmatpush1.msra.mxu0 0.0
  %970 = vmatprep.subr.mxu0 0.0
  %971 = vmatpush1.msra.mxu0 0.0
  %972 = vmatprep.subr.mxu0 0.0
  %973 = vmatpush1.msra.mxu0 0.0
  %974 = vmatprep.subr.mxu0 0.0
  %975 = vmatpush1.msra.mxu0 0.0
  %976 = vmatprep.subr.mxu0 0.0
  %977 = vmatpush1.msra.mxu0 0.0
  %978 = vmatprep.subr.mxu0 0.0
  %979 = vmatpush1.msra.mxu0 0.0
  %980 = vmatprep.subr.mxu0 0.0
  %981 = vmatpush1.msra.mxu0 0.0
  %982 = vmatprep.subr.mxu0 0.0
  %983 = vmatpush1.msra.mxu0 0.0
  %984 = vmatprep.subr.mxu0 0.0
  %985 = vmatpush1.msra.mxu0 0.0
  %986 = vmatprep.subr.mxu0 0.0
  %987 = vmatpush1.msra.mxu0 0.0
  %988 = vmatprep.subr.mxu0 0.0
  %989 = vmatpush1.msra.mxu0 0.0
  %990 = vmatprep.subr.mxu0 0.0
  %991 = vmatpush1.msra.mxu0 0.0
  %992 = vmatprep.subr.mxu0 0.0
  %993 = vmatpush1.msra.mxu0 0.0
  %994 = vmatprep.subr.mxu0 0.0
  %995 = vmatpush1.msra.mxu0 0.0
  %996 = vmatprep.mubr.f32.mxu0 0.0
  %997 = vmatmul.mubr.f32.gmra.mrb[0].mxu0 %v916
  %v998 = vpop.f32.mrb[0].mxu0
  %v999 = vadd.f32 0.0, %v998
  %v1000 = vpop.f32.mrb[0].mxu0
  %1001 = vdwg.mxu0
  %v1002 = vadd.f32 %v899, %v999
  %1003 = vst [vmem:[#allocation2] sm:$0xff] %v1002
  // Predicated region
  $region42: #{equivariant_update.1} parent=0 // pred_check
    %p1004 = pneg %p33
  $region43: #{equivariant_update.1} parent=0 // pred_check_branch
    %1006 = sbr.rel (%p1004) target = $region45
  $region44: #{equivariant_update.1} parent=0 // pred_region
    %v1007 = vld [vmem:[#allocation2] sm:$0xff]
    %v1008 = vmul.f32 %v1007, 0.01
    %v1009 = vld [vmem:[%s8] sm:$0xff]
    %v1010 = vadd.f32 %v1009, %v1008
    %1011 = vst [vmem:[%s9] sm:$0xff] %v1010
  $region45: #{equivariant_update.1} parent=0 // pred_fallthru
    _
  // Predicated region
  $region46: #{equivariant_update.1} parent=0 // pred_check
    _
  $region47: #{equivariant_update.1} parent=0 // pred_check_branch
    %1013 = sbr.rel (0) target = $region49
  $region48: #{equivariant_update.1} parent=0 // pred_region
    _
  $region49: #{equivariant_update.1} parent=0 // pred_fallthru
    _
  // Predicated region
  $region50: #{equivariant_update.1} parent=0 // pred_check
    _
  $region51: #{equivariant_update.1} parent=0 // pred_check_branch
    %1015 = sbr.rel (0) target = $region53
  $region52: #{equivariant_update.1} parent=0 // pred_region
    _
  $region53: #{equivariant_update.1} parent=0 // pred_fallthru
    _

</llo_original>
